<compile_context>
chip_gen: v6e
topology: v6e:2x2x1
jax: 0.10.0
libtpu: 0.0.40
codegen_flags: <defaults>
</compile_context>

<pallas_src>
import jax
import jax.numpy as jnp
from jax.experimental import pallas as pl
from jax.experimental.pallas import tpu as pltpu


def _concat_squash_kernel(x_ref, wl_ref, bl_ref, gate_ref, hbias_ref, o_ref):
    """x_ref: (TB, N, dim_in); wl_ref: (dim_in, TN); bl_ref: (1, TN);
    gate_ref / hbias_ref: (TB, 1, TN); o_ref: (TB, N, TN)."""
    tb, n, dim_in = x_ref.shape
    tn = o_ref.shape[-1]

    # Collapse (TB, N) -> rows for one MXU matmul.  This is a free layout
    # relabel when N % 8 == 0 (the wrapper forces TB == 1 otherwise, where the
    # reshape is just a leading-1 squeeze).
    x2d = x_ref[...].reshape(tb * n, dim_in)
    y = jnp.dot(x2d, wl_ref[...], preferred_element_type=jnp.float32)
    y = (y + bl_ref[...]).reshape(tb, n, tn)

    # Per-batch gate / hyper-bias broadcast over the sequence dim (epilogue).
    o_ref[...] = (y * gate_ref[...] + hbias_ref[...]).astype(o_ref.dtype)


def concat_squash_linear(context, x, w_layer, b_layer, w_gate, b_gate, w_bias,
                         *, target_rows=512):
    """context: (B, 1+dim_c); x: (B, N, dim_in). Weights already (in, out)."""
    B, N, dim_in = x.shape
    dim_out = w_layer.shape[1]

    # ---- Hyper-network hoisted to XLA (tiny (B, c1) x (c1, dim_out) GEMMs) ----
    ctx = context.astype(jnp.float32)
    gate = jax.nn.sigmoid(ctx @ w_gate.astype(jnp.float32)
                          + b_gate.astype(jnp.float32).reshape(1, dim_out))
    hbias = ctx @ w_bias.astype(jnp.float32)
    gate = gate[:, None, :]        # (B, 1, dim_out)
    hbias = hbias[:, None, :]      # (B, 1, dim_out)

    b_layer2d = b_layer.reshape(1, dim_out)

    # ---- Tile selection ------------------------------------------------------
    # Batch tile: pack several whole batch elements per grid step so the M tile
    # is hundreds of rows.  TB must divide B; the in-kernel (TB, N) collapse
    # needs N % 8 == 0, otherwise fall back to one batch element per step.
    if N % 8 == 0:
        tb = 1
        for d in range(B, 0, -1):
            if B % d == 0 and d * N <= max(target_rows, N):
                tb = d
                break
    else:
        tb = 1

    # dim_out tile: full (small) dim_out, or a lane-dense multiple of 128.
    if dim_out % 256 == 0 and dim_out >= 512:
        tn = 256
    elif dim_out % 128 == 0 and dim_out >= 256:
        tn = 128
    else:
        tn = dim_out

    grid = (B // tb, dim_out // tn)

    return pl.pallas_call(
        _concat_squash_kernel,
        out_shape=jax.ShapeDtypeStruct((B, N, dim_out), x.dtype),
        grid_spec=pltpu.PrefetchScalarGridSpec(
            num_scalar_prefetch=0,
            grid=grid,
            in_specs=[
                pl.BlockSpec((tb, N, dim_in), lambda bi, oi: (bi, 0, 0)),   # x slab
                pl.BlockSpec((dim_in, tn), lambda bi, oi: (0, oi)),         # W_layer tile
                pl.BlockSpec((1, tn), lambda bi, oi: (0, oi)),              # b_layer tile
                pl.BlockSpec((tb, 1, tn), lambda bi, oi: (bi, 0, oi)),      # gate
                pl.BlockSpec((tb, 1, tn), lambda bi, oi: (bi, 0, oi)),      # hyper bias
            ],
            out_specs=pl.BlockSpec((tb, N, tn), lambda bi, oi: (bi, 0, oi)),
        ),
        compiler_params=pltpu.CompilerParams(
            dimension_semantics=("parallel", "parallel"),
            vmem_limit_bytes=48 * 1024 * 1024,   # > scoped defaults, < v7x physical
        ),
    )(x, w_layer, b_layer2d, gate, hbias)


if __name__ == "__main__":
    # Small shapes consistent with the module.
    B, N = 2, 8
    dim_in, dim_out, dim_c = 32, 32, 3
    c1 = 1 + dim_c

    key = jax.random.PRNGKey(0)
    ks = jax.random.split(key, 7)

    # Deterministic synthetic parameters (nn.Linear shapes, stored transposed).
    w_layer = jax.random.normal(ks[0], (dim_in, dim_out), jnp.float32) * 0.1
    b_layer = jax.random.normal(ks[1], (dim_out,), jnp.float32) * 0.1
    w_gate = jax.random.normal(ks[2], (c1, dim_out), jnp.float32) * 0.1
    b_gate = jax.random.normal(ks[3], (dim_out,), jnp.float32) * 0.1
    w_bias = jax.random.normal(ks[4], (c1, dim_out), jnp.float32) * 0.1

    context = jax.random.normal(ks[5], (B, c1), jnp.float32)
    x = jax.random.normal(ks[6], (B, N, dim_in), jnp.float32)

    out = concat_squash_linear(context, x, w_layer, b_layer,
                               w_gate, b_gate, w_bias)
    out = jax.block_until_ready(out)

    # Pure-JAX reference for correctness check.
    gate_ref = jax.nn.sigmoid(context @ w_gate + b_gate[None, :])[:, None, :]
    bias_ref = (context @ w_bias)[:, None, :]
    ref = (x @ w_layer + b_layer[None, None, :]) * gate_ref + bias_ref

    assert out.shape == (B, N, dim_out)
    assert jnp.allclose(out, ref, atol=1e-5, rtol=1e-5), "mismatch vs reference"

    print("KERNEL_OK")
</pallas_src>

<mosaic_0001>
module attributes {stable_mosaic.version = 11 : i64} {
  func.func @_concat_squash_kernel(%arg0: i32, %arg1: i32, %arg2: memref<2x8x32xf32, #tpu.memory_space<vmem>>, %arg3: memref<32x32xf32, #tpu.memory_space<vmem>>, %arg4: memref<1x32xf32, #tpu.memory_space<vmem>>, %arg5: memref<2x1x32xf32, #tpu.memory_space<vmem>>, %arg6: memref<2x1x32xf32, #tpu.memory_space<vmem>>, %arg7: memref<2x8x32xf32, #tpu.memory_space<vmem>>) attributes {dimension_semantics = [#tpu.dimension_semantics<parallel>, #tpu.dimension_semantics<parallel>], iteration_bounds = array<i64: 1, 1>, scalar_prefetch = 0 : i64, scratch_operands = 0 : i64, tpu.core_type = #tpu.core_type<tc>, window_params = [{transform_indices = @transform_0, window_bounds = array<i64: 2, 8, 32>}, {transform_indices = @transform_1, window_bounds = array<i64: 32, 32>}, {transform_indices = @transform_2, window_bounds = array<i64: 1, 32>}, {transform_indices = @transform_3, window_bounds = array<i64: 2, 1, 32>}, {transform_indices = @transform_4, window_bounds = array<i64: 2, 1, 32>}, {transform_indices = @transform_5, window_bounds = array<i64: 2, 8, 32>}]} {
    %c0 = arith.constant 0 : index
    %c0_0 = arith.constant 0 : index
    %c0_1 = arith.constant 0 : index
    %0 = vector.load %arg2[%c0, %c0_0, %c0_1] : memref<2x8x32xf32, #tpu.memory_space<vmem>>, vector<2x8x32xf32>
    %1 = vector.shape_cast %0 : vector<2x8x32xf32> to vector<16x32xf32>
    %c0_2 = arith.constant 0 : index
    %c0_3 = arith.constant 0 : index
    %2 = vector.load %arg3[%c0_2, %c0_3] : memref<32x32xf32, #tpu.memory_space<vmem>>, vector<32x32xf32>
    %cst = arith.constant dense<0.000000e+00> : vector<16x32xf32>
    %3 = tpu.matmul %1, %2, %cst {dimension_numbers = #tpu.dot_dimension_numbers<[1], [0], [0], [1], [0, 0, 1, 1], [], []>} : vector<16x32xf32>, vector<32x32xf32>, vector<16x32xf32> -> vector<16x32xf32>
    %c0_4 = arith.constant 0 : index
    %c0_5 = arith.constant 0 : index
    %4 = vector.load %arg4[%c0_4, %c0_5] : memref<1x32xf32, #tpu.memory_space<vmem>>, vector<1x32xf32>
    %5 = vector.broadcast %4 : vector<1x32xf32> to vector<16x32xf32>
    %6 = arith.addf %3, %5 : vector<16x32xf32>
    %7 = vector.shape_cast %6 : vector<16x32xf32> to vector<2x8x32xf32>
    %c0_6 = arith.constant 0 : index
    %c0_7 = arith.constant 0 : index
    %c0_8 = arith.constant 0 : index
    %8 = vector.load %arg5[%c0_6, %c0_7, %c0_8] : memref<2x1x32xf32, #tpu.memory_space<vmem>>, vector<2x1x32xf32>
    %9 = vector.broadcast %8 : vector<2x1x32xf32> to vector<2x8x32xf32>
    %10 = arith.mulf %7, %9 : vector<2x8x32xf32>
    %c0_9 = arith.constant 0 : index
    %c0_10 = arith.constant 0 : index
    %c0_11 = arith.constant 0 : index
    %11 = vector.load %arg6[%c0_9, %c0_10, %c0_11] : memref<2x1x32xf32, #tpu.memory_space<vmem>>, vector<2x1x32xf32>
    %12 = vector.broadcast %11 : vector<2x1x32xf32> to vector<2x8x32xf32>
    %13 = arith.addf %10, %12 : vector<2x8x32xf32>
    %c0_12 = arith.constant 0 : index
    %c0_13 = arith.constant 0 : index
    %c0_14 = arith.constant 0 : index
    %14 = vector.load %arg7[%c0_12, %c0_13, %c0_14] : memref<2x8x32xf32, #tpu.memory_space<vmem>>, vector<2x8x32xf32>
    tpu.vector_store %arg7[%c0_12, %c0_13, %c0_14], %13 {strides = array<i32>} : memref<2x8x32xf32, #tpu.memory_space<vmem>>, vector<2x8x32xf32>,
    return
  }
  func.func @transform_0(%arg0: i32, %arg1: i32) -> (i32, i32, i32) {
    %c0_i32 = arith.constant 0 : i32
    %c0_i32_0 = arith.constant 0 : i32
    %c0_i32_1 = arith.constant 0 : i32
    return %arg0, %c0_i32, %c0_i32_0 : i32, i32, i32
  }
  func.func @transform_1(%arg0: i32, %arg1: i32) -> (i32, i32) {
    %c0_i32 = arith.constant 0 : i32
    %c0_i32_0 = arith.constant 0 : i32
    return %c0_i32, %arg1 : i32, i32
  }
  func.func @transform_2(%arg0: i32, %arg1: i32) -> (i32, i32) {
    %c0_i32 = arith.constant 0 : i32
    %c0_i32_0 = arith.constant 0 : i32
    return %c0_i32, %arg1 : i32, i32
  }
  func.func @transform_3(%arg0: i32, %arg1: i32) -> (i32, i32, i32) {
    %c0_i32 = arith.constant 0 : i32
    %c0_i32_0 = arith.constant 0 : i32
    return %arg0, %c0_i32, %arg1 : i32, i32, i32
  }
  func.func @transform_4(%arg0: i32, %arg1: i32) -> (i32, i32, i32) {
    %c0_i32 = arith.constant 0 : i32
    %c0_i32_0 = arith.constant 0 : i32
    return %arg0, %c0_i32, %arg1 : i32, i32, i32
  }
  func.func @transform_5(%arg0: i32, %arg1: i32) -> (i32, i32, i32) {
    %c0_i32 = arith.constant 0 : i32
    %c0_i32_0 = arith.constant 0 : i32
    return %arg0, %c0_i32, %arg1 : i32, i32, i32
  }
}

</mosaic_0001>

<llo_original>
// kernel: tpu_custom_call.1
$region0: #{tpu_custom_call.1}
  #allocation0 [shape = 'u32[]', space=smem, size = 0x4, offset = 0x4, fixed_abs, tag = 'smem constant byte address 0x4 - core index']
  #allocation1 [shape = 'u32[144,128]{1,0:T(1,128)}', space=vmem, size = 0x12000, scoped, tag = 'internal scratch']
  %s0 = inlined_call_operand.hbm [shape: f32[2,8,32], index: 0, kind: input, shape index: {}]
  %s1 = inlined_call_operand.hbm [shape: f32[32,32], index: 1, kind: input, shape index: {}]
  %s2 = inlined_call_operand.vmem [shape: f32[1,32], index: 2, kind: input, shape index: {}]
  %s3 = inlined_call_operand.vmem [shape: f32[2,1,32], index: 3, kind: input, shape index: {}]
  %s4 = inlined_call_operand.vmem [shape: f32[2,1,32], index: 4, kind: input, shape index: {}]
  %s5 = inlined_call_operand.hbm [shape: f32[2,8,32], index: 5, kind: output, shape index: {}]
  %s6 = sld [smem:[#allocation0]]
  $region38: #{tpu_custom_call.1} parent=0
    _
  %s8 = ssub.s32 1, %s6
  %s9 = scalar_select 0, %s8, %s6
  $region1: #{tpu_custom_call.1} parent=0
    #allocation2 [shape = 'u8[8192]{0}', space=vmem, size = 0x2000, scoped, tag = 'input window, operand 0, single buffered']
    #allocation3 [shape = 's32[1]{0}', space=sflag, size = 0x4, scoped, tag = 'scoped memory for tpu_custom_call.1']
    #allocation4 [shape = 's32[1]{0}', space=sflag, size = 0x4, scoped, tag = 'scoped memory for tpu_custom_call.1']
    #allocation5 [shape = 'u8[16384]{0}', space=vmem, size = 0x4000, scoped, tag = 'input window, operand 1, single buffered']
    #allocation6 [shape = 's32[1]{0}', space=sflag, size = 0x4, scoped, tag = 'scoped memory for tpu_custom_call.1']
    #allocation7 [shape = 'u8[8192]{0}', space=vmem, size = 0x2000, scoped, tag = 'output window, operand 0, single buffered']
    %10 = vsyncpa [#allocation3], 0
    %11 = vsyncpa [#allocation6], 0
    %12 = vsyncpa [#allocation4], 0
    // Predicated region
    $region2: #{tpu_custom_call.1} parent=1 // pred_check
      _
    $region3: #{tpu_custom_call.1} parent=1 // pred_check_branch
      %14 = sbr.rel (0) target = $region5
    $region4: #{tpu_custom_call.1} parent=1 // pred_region
      %s16 = ssub.s32 256, 256
      %17 = vsyncadd [#allocation3], %s16
      %s18 = sshll.u32 [#allocation2], 4
      %s19 = int_to_ptr.vmem [resolvable:$true] %s18
      %24 = dma.hbm_to_vmem [thread:$0]  %s0, 256, %s19, [#allocation3], 128, 128, 8
    $region5: #{tpu_custom_call.1} parent=1 // pred_fallthru
      _
    // Predicated region
    $region6: #{tpu_custom_call.1} parent=1 // pred_check
      _
    $region7: #{tpu_custom_call.1} parent=1 // pred_check_branch
      %26 = sbr.rel (0) target = $region9
    $region8: #{tpu_custom_call.1} parent=1 // pred_region
      %s28 = ssub.s32 512, 512
      %29 = vsyncadd [#allocation6], %s28
      %s30 = sshll.u32 [#allocation5], 4
      %s31 = int_to_ptr.vmem [resolvable:$true] %s30
      %36 = dma.hbm_to_vmem [thread:$0]  %s1, 512, %s31, [#allocation6], 128, 128, 8
    $region9: #{tpu_custom_call.1} parent=1 // pred_fallthru
      _
    // Predicated region
    $region10: #{tpu_custom_call.1} parent=1 // pred_check
      _
    $region11: #{tpu_custom_call.1} parent=1 // pred_check_branch
      %38 = sbr.rel (0) target = $region13
    $region12: #{tpu_custom_call.1} parent=1 // pred_region
      _
    $region13: #{tpu_custom_call.1} parent=1 // pred_fallthru
      _
    // Predicated region
    $region14: #{tpu_custom_call.1} parent=1 // pred_check
      _
    $region15: #{tpu_custom_call.1} parent=1 // pred_check_branch
      %40 = sbr.rel (0) target = $region17
    $region16: #{tpu_custom_call.1} parent=1 // pred_region
      _
    $region17: #{tpu_custom_call.1} parent=1 // pred_fallthru
      _
    // Predicated region
    $region18: #{tpu_custom_call.1} parent=1 // pred_check
      _
    $region19: #{tpu_custom_call.1} parent=1 // pred_check_branch
      %42 = sbr.rel (0) target = $region21
    $region20: #{tpu_custom_call.1} parent=1 // pred_region
      _
    $region21: #{tpu_custom_call.1} parent=1 // pred_fallthru
      _
    // Predicated region
    $region22: #{tpu_custom_call.1} parent=1 // pred_check
      _
    $region23: #{tpu_custom_call.1} parent=1 // pred_check_branch
      %44 = sbr.rel (0) target = $region25
    $region24: #{tpu_custom_call.1} parent=1 // pred_region
      %45 = dma.done [#allocation3], 256
    $region25: #{tpu_custom_call.1} parent=1 // pred_fallthru
      _
    // Predicated region
    $region26: #{tpu_custom_call.1} parent=1 // pred_check
      _
    $region27: #{tpu_custom_call.1} parent=1 // pred_check_branch
      %47 = sbr.rel (0) target = $region29
    $region28: #{tpu_custom_call.1} parent=1 // pred_region
      %48 = dma.done [#allocation6], 512
    $region29: #{tpu_custom_call.1} parent=1 // pred_fallthru
      _
    %v49 = vld [vmem:[#allocation2] sm:$0xff]
    %v50 = vld [vmem:[#allocation2 + $0x8] sm:$0xff]
    %v51 = vld [vmem:[#allocation5] sm:$0xff]
    %v52 = vld [vmem:[#allocation5 + $0x8] sm:$0xff]
    %v53 = vld [vmem:[#allocation5 + $0x10] sm:$0xff]
    %v54 = vld [vmem:[#allocation5 + $0x18] sm:$0xff]
    %v55 = vld [vmem:[%s2] sm:$0x1]
    %v57 = vlaneseq
    %v58 = vshrl.u32 %v57, 7
    %v59 = vsub.s32 0, %v58
    %v60 = vrot.slane %v55, %v59
    %vm62 = vcmask 261120
    %v64 = vsel %vm62, %v49, 0
    %v67 = vsel %vm62, %v50, 0
    %69 = vmatprep.subr.mxu0 0.0
    %70 = vmatpush1.msra.mxu0 0.0
    %71 = vmatprep.subr.mxu0 0.0
    %72 = vmatpush1.msra.mxu0 0.0
    %73 = vmatprep.subr.mxu0 0.0
    %74 = vmatpush1.msra.mxu0 0.0
    %75 = vmatprep.subr.mxu0 0.0
    %76 = vmatpush1.msra.mxu0 0.0
    %77 = vmatprep.subr.mxu0 0.0
    %78 = vmatpush1.msra.mxu0 0.0
    %79 = vmatprep.subr.mxu0 0.0
    %80 = vmatpush1.msra.mxu0 0.0
    %81 = vmatprep.subr.mxu0 0.0
    %82 = vmatpush1.msra.mxu0 0.0
    %83 = vmatprep.subr.mxu0 0.0
    %84 = vmatpush1.msra.mxu0 0.0
    %85 = vmatprep.subr.mxu0 0.0
    %86 = vmatpush1.msra.mxu0 0.0
    %87 = vmatprep.subr.mxu0 0.0
    %88 = vmatpush1.msra.mxu0 0.0
    %89 = vmatprep.subr.mxu0 0.0
    %90 = vmatpush1.msra.mxu0 0.0
    %91 = vmatprep.subr.mxu0 0.0
    %92 = vmatpush1.msra.mxu0 0.0
    %93 = vmatprep.subr.mxu0 0.0
    %94 = vmatpush1.msra.mxu0 %v54
    %95 = vmatprep.subr.mxu0 0.0
    %96 = vmatpush1.msra.mxu0 %v53
    %97 = vmatprep.subr.mxu0 0.0
    %98 = vmatpush1.msra.mxu0 %v52
    %99 = vmatprep.subr.mxu0 0.0
    %100 = vmatpush1.msra.mxu0 %v51
    %101 = vmatprep.subr.mxu0 0.0
    %102 = vmatpush2.msra.mxu0 0.0
    %103 = vmatprep.subr.mxu0 0.0
    %104 = vmatpush2.msra.mxu0 0.0
    %105 = vmatprep.subr.mxu0 0.0
    %106 = vmatpush2.msra.mxu0 0.0
    %107 = vmatprep.subr.mxu0 0.0
    %108 = vmatpush2.msra.mxu0 0.0
    %109 = vmatprep.subr.mxu0 0.0
    %110 = vmatpush2.msra.mxu0 0.0
    %111 = vmatprep.subr.mxu0 0.0
    %112 = vmatpush2.msra.mxu0 0.0
    %113 = vmatprep.subr.mxu0 0.0
    %114 = vmatpush2.msra.mxu0 0.0
    %115 = vmatprep.subr.mxu0 0.0
    %116 = vmatpush2.msra.mxu0 0.0
    %117 = vmatprep.subr.mxu0 0.0
    %118 = vmatpush2.msra.mxu0 0.0
    %119 = vmatprep.subr.mxu0 0.0
    %120 = vmatpush2.msra.mxu0 0.0
    %121 = vmatprep.subr.mxu0 0.0
    %122 = vmatpush2.msra.mxu0 0.0
    %123 = vmatprep.subr.mxu0 0.0
    %124 = vmatpush2.msra.mxu0 0.0
    %125 = vmatprep.subr.mxu0 0.0
    %126 = vmatpush2.msra.mxu0 0.0
    %127 = vmatprep.subr.mxu0 0.0
    %128 = vmatpush2.msra.mxu0 0.0
    %129 = vmatprep.subr.mxu0 0.0
    %130 = vmatpush2.msra.mxu0 0.0
    %131 = vmatprep.subr.mxu0 0.0
    %132 = vmatpush2.msra.mxu0 0.0
    %133 = vmatprep.mubr.f32.mxu0 0.0
    %134 = vmatmul.mubr.f32.gmra.mxu0 %v64
    %v135 = vpop.f32.mrf.mxu0
    %v136 = vadd.f32 %v60, %v135
    %v137 = vpop.f32.mrf.mxu0
    %138 = vmatprep.mubr.f32.mxu0 0.0
    %139 = vmatmul.mubr.f32.gmra.mxu0 %v67
    %v140 = vpop.f32.mrf.mxu0
    %v141 = vadd.f32 %v60, %v140
    %v142 = vpop.f32.mrf.mxu0
    %143 = vdwg.mxu0
    %v144 = vld [vmem:[%s3] sm:$0x1]
    %v145 = vld [vmem:[%s3 + $0x1] sm:$0x1]
    %v148 = vlaneseq
    %v149 = vshrl.u32 %v148, 7
    %v150 = vsub.s32 0, %v149
    %v151 = vrot.slane %v144, %v150
    %v152 = vlaneseq
    %v153 = vshrl.u32 %v152, 7
    %v154 = vsub.s32 0, %v153
    %v155 = vrot.slane %v145, %v154
    %v158 = vmul.f32 %v136, %v151
    %v159 = vmul.f32 %v141, %v155
    %v160 = vld [vmem:[%s4] sm:$0x1]
    %v161 = vld [vmem:[%s4 + $0x1] sm:$0x1]
    %v164 = vlaneseq
    %v165 = vshrl.u32 %v164, 7
    %v166 = vsub.s32 0, %v165
    %v167 = vrot.slane %v160, %v166
    %v168 = vlaneseq
    %v169 = vshrl.u32 %v168, 7
    %v170 = vsub.s32 0, %v169
    %v171 = vrot.slane %v161, %v170
    %v174 = vadd.f32 %v158, %v167
    %v175 = vadd.f32 %v159, %v171
    %176 = vst.msk [vmem:[#allocation7] sm:$0xff] %vm62, %v174
    %177 = vst.msk [vmem:[#allocation7 + $0x8] sm:$0xff] %vm62, %v175
    // Predicated region
    $region30: #{tpu_custom_call.1} parent=1 // pred_check
      _
    $region31: #{tpu_custom_call.1} parent=1 // pred_check_branch
      %179 = sbr.rel (0) target = $region33
    $region32: #{tpu_custom_call.1} parent=1 // pred_region
      %s181 = ssub.s32 256, 256
      %182 = vsyncadd [#allocation4], %s181
      %s183 = sshll.u32 [#allocation7], 4
      %s184 = int_to_ptr.vmem [resolvable:$true] %s183
      %189 = dma.vmem_to_hbm [thread:$0]  %s184, 256, %s5, [#allocation4], 128, 128, 8
    $region33: #{tpu_custom_call.1} parent=1 // pred_fallthru
      _
    // Predicated region
    $region34: #{tpu_custom_call.1} parent=1 // pred_check
      _
    $region35: #{tpu_custom_call.1} parent=1 // pred_check_branch
      %191 = sbr.rel (0) target = $region37
    $region36: #{tpu_custom_call.1} parent=1 // pred_region
      %192 = dma.done [#allocation4], 256
    $region37: #{tpu_custom_call.1} parent=1 // pred_fallthru
      _
    %193 = vsyncpa [#allocation3], 1
    %194 = vsyncpa [#allocation6], 1
    %195 = vsyncpa [#allocation4], 1

</llo_original>
